<compile_context>
chip_gen: v5e
topology: v5e:2x2
jax: 0.10.0
libtpu: 0.0.40
codegen_flags: <defaults>
</compile_context>

<pallas_src>
import math
from typing import NamedTuple

import jax
import jax.numpy as jnp
from jax.experimental import pallas as pl
from jax.experimental.pallas import tpu as pltpu

_LANE = 128
_SUBLANE = 8


def _round_up(n: int, m: int) -> int:
    return ((n + m - 1) // m) * m


class FusedHeadParams(NamedTuple):
    w_fused: jax.Array   # (D, n_pad) in compute dtype (bf16 by default)
    b_fused: jax.Array   # (1, n_pad) f32
    cls_dim: int         # C
    bbox_dim: int        # 4*C
    bbox_off: int        # column offset of the bbox head in the fused layout
    out_dtype: jnp.dtype


def fuse_two_headed_params(w_cls, b_cls, w_bbox, b_bbox, *,
                           compute_dtype=jnp.bfloat16):
    """Build the fused, lane-padded weight/bias ONCE (outside the forward path)."""
    D, C = w_cls.shape
    C4 = w_bbox.shape[1]
    # Lane-align the bbox head start only when C is large enough that free
    # (aligned) slicing beats the extra pad columns; tiny C stays compact.
    bbox_off = _round_up(C, _LANE) if C >= 64 else C
    n = bbox_off + C4
    n_pad = _round_up(n, _LANE)

    w = jnp.concatenate(
        [w_cls,
         jnp.zeros((D, bbox_off - C), w_cls.dtype),
         w_bbox,
         jnp.zeros((D, n_pad - n), w_cls.dtype)], axis=1)
    b = jnp.concatenate(
        [b_cls.reshape(1, -1),
         jnp.zeros((1, bbox_off - C), b_cls.dtype),
         b_bbox.reshape(1, -1),
         jnp.zeros((1, n_pad - n), b_cls.dtype)], axis=1)

    return FusedHeadParams(
        w_fused=w.astype(compute_dtype),
        b_fused=b.astype(jnp.float32),
        cls_dim=C,
        bbox_dim=C4,
        bbox_off=bbox_off,
        out_dtype=jnp.dtype(w_cls.dtype),
    )


def _fused_heads_kernel(x_ref, w_ref, b_ref, out_ref):
    """out = x @ [W_cls | W_bbox] + [b_cls | b_bbox] for one batch tile."""
    acc = jnp.dot(x_ref[...], w_ref[...],
                  preferred_element_type=jnp.float32)   # (tb, n_pad) f32 on MXU
    out_ref[...] = (acc + b_ref[...]).astype(out_ref.dtype)  # f32 bias add, lane-dense store


def two_headed_forward(x, params: FusedHeadParams, *, tile_b=256):
    """x: (B, D); returns (cls_scores (B, C), bbox_pred (B, 4C))."""
    B, D = x.shape
    w, b = params.w_fused, params.b_fused
    n_pad = w.shape[1]

    if x.dtype != w.dtype:
        x = x.astype(w.dtype)   # bf16 operands; accumulation stays f32 in-kernel

    # Batch tiling: no full-array pad of x; ragged last block handled by Pallas
    # (OOB input rows are garbage, OOB output writes are dropped).
    tb = min(tile_b, _round_up(B, _SUBLANE))
    if B >= 2 * _SUBLANE and pl.cdiv(B, tb) < 2:
        # >=2 batch tiles so "parallel" can occupy both TensorCores on v7x.
        tb = _round_up(pl.cdiv(B, 2), _SUBLANE)
    num_tiles = pl.cdiv(B, tb)

    out_dtype = params.out_dtype
    x_bytes = 2 * tb * D * x.dtype.itemsize                 # double-buffered x tiles
    o_bytes = 2 * tb * n_pad * jnp.dtype(out_dtype).itemsize  # double-buffered out tiles
    w_bytes = 2 * D * n_pad * w.dtype.itemsize              # resident fused weight (2 bufs, conservative)
    bb_bytes = 2 * n_pad * b.dtype.itemsize
    vmem_limit = int(min(100 * 1024 * 1024,
                         max(2 * (x_bytes + o_bytes + w_bytes + bb_bytes),
                             8 * 1024 * 1024)))

    cost = pl.CostEstimate(
        flops=2 * B * D * n_pad,
        transcendentals=0,
        bytes_accessed=(B * D * x.dtype.itemsize
                        + w.size * w.dtype.itemsize
                        + b.size * b.dtype.itemsize
                        + B * n_pad * jnp.dtype(out_dtype).itemsize),
    )

    fused_out = pl.pallas_call(
        _fused_heads_kernel,
        out_shape=jax.ShapeDtypeStruct((B, n_pad), out_dtype),
        grid_spec=pltpu.PrefetchScalarGridSpec(
            num_scalar_prefetch=0,
            grid=(num_tiles,),
            in_specs=[
                pl.BlockSpec((tb, D), lambda i: (i, 0)),      # x: streamed per batch tile
                pl.BlockSpec((D, n_pad), lambda i: (0, 0)),   # fused W: resident in VMEM
                pl.BlockSpec((1, n_pad), lambda i: (0, 0)),   # fused bias: resident
            ],
            out_specs=pl.BlockSpec((tb, n_pad), lambda i: (i, 0)),
        ),
        compiler_params=pltpu.CompilerParams(
            dimension_semantics=("parallel",),   # shard batch tiles across TCs (v7x)
            vmem_limit_bytes=vmem_limit,
        ),
        cost_estimate=cost,
    )(x, w, b)

    C, C4, off = params.cls_dim, params.bbox_dim, params.bbox_off
    return fused_out[:, :C], fused_out[:, off:off + C4]


def init_two_headed_params(key, input_dimension, out_dim, dtype=jnp.float32):
    """Deterministic init mimicking torch.nn.Linear default (U(-k, k), k=1/sqrt(fan_in))."""
    k = 1.0 / math.sqrt(input_dimension)
    k_cls_w, k_cls_b, k_bb_w, k_bb_b = jax.random.split(key, 4)
    w_cls = jax.random.uniform(k_cls_w, (input_dimension, out_dim),
                               minval=-k, maxval=k, dtype=dtype)
    b_cls = jax.random.uniform(k_cls_b, (1, out_dim),
                               minval=-k, maxval=k, dtype=dtype)
    w_bbox = jax.random.uniform(k_bb_w, (input_dimension, out_dim * 4),
                                minval=-k, maxval=k, dtype=dtype)
    b_bbox = jax.random.uniform(k_bb_b, (1, out_dim * 4),
                                minval=-k, maxval=k, dtype=dtype)
    return w_cls, b_cls, w_bbox, b_bbox


if __name__ == "__main__":
    key = jax.random.PRNGKey(0)
    k_x, k_p = jax.random.split(key)

    batch = 8
    input_dimension = 32
    out_dim = 4

    x = jax.random.normal(k_x, (batch, input_dimension), dtype=jnp.float32)
    w_cls, b_cls, w_bbox, b_bbox = init_two_headed_params(
        k_p, input_dimension, out_dim)

    # Fused/padded params are built ONCE, outside the per-call path.
    fused_params = fuse_two_headed_params(w_cls, b_cls, w_bbox, b_bbox,
                                          compute_dtype=jnp.bfloat16)

    cls_scores, bbox_pred = two_headed_forward(x, fused_params)
    jax.block_until_ready((cls_scores, bbox_pred))

    # Pure-JAX f32 reference of the original Linear-head semantics.
    ref_cls = x @ w_cls + b_cls
    ref_bbox = x @ w_bbox + b_bbox
    assert cls_scores.shape == (batch, out_dim)
    assert bbox_pred.shape == (batch, out_dim * 4)
    # bf16 MXU operands (f32 accumulation) => loosened tolerance vs. f32 reference.
    assert jnp.allclose(cls_scores, ref_cls, atol=5e-2, rtol=5e-2)
    assert jnp.allclose(bbox_pred, ref_bbox, atol=5e-2, rtol=5e-2)

    print("KERNEL_OK")
</pallas_src>

<mosaic_0001>
module attributes {stable_mosaic.version = 11 : i64} {
  func.func @_fused_heads_kernel(%arg0: i32, %arg1: memref<8x32xbf16, #tpu.memory_space<vmem>>, %arg2: memref<32x128xbf16, #tpu.memory_space<vmem>>, %arg3: memref<1x128xf32, #tpu.memory_space<vmem>>, %arg4: memref<8x128xf32, #tpu.memory_space<vmem>>) attributes {dimension_semantics = [#tpu.dimension_semantics<parallel>], iteration_bounds = array<i64: 1>, scalar_prefetch = 0 : i64, scratch_operands = 0 : i64, tpu.core_type = #tpu.core_type<tc>, window_params = [{transform_indices = @transform_0, window_bounds = array<i64: 8, 32>}, {pipeline_mode = #tpu.pipeline_mode<synchronous>, transform_indices = @transform_1, window_bounds = array<i64: 32, 128>}, {pipeline_mode = #tpu.pipeline_mode<synchronous>, transform_indices = @transform_2, window_bounds = array<i64: 1, 128>}, {transform_indices = @transform_3, window_bounds = array<i64: 8, 128>}]} {
    %c0 = arith.constant 0 : index
    %c0_0 = arith.constant 0 : index
    %0 = vector.load %arg1[%c0, %c0_0] : memref<8x32xbf16, #tpu.memory_space<vmem>>, vector<8x32xbf16>
    %c0_1 = arith.constant 0 : index
    %c0_2 = arith.constant 0 : index
    %1 = vector.load %arg2[%c0_1, %c0_2] : memref<32x128xbf16, #tpu.memory_space<vmem>>, vector<32x128xbf16>
    %cst = arith.constant dense<0.000000e+00> : vector<8x128xf32>
    %2 = tpu.matmul %0, %1, %cst {dimension_numbers = #tpu.dot_dimension_numbers<[1], [0], [0], [1], [0, 0, 1, 1], [], []>} : vector<8x32xbf16>, vector<32x128xbf16>, vector<8x128xf32> -> vector<8x128xf32>
    %c0_3 = arith.constant 0 : index
    %c0_4 = arith.constant 0 : index
    %3 = vector.load %arg3[%c0_3, %c0_4] : memref<1x128xf32, #tpu.memory_space<vmem>>, vector<1x128xf32>
    %4 = vector.broadcast %3 : vector<1x128xf32> to vector<8x128xf32>
    %5 = arith.addf %2, %4 : vector<8x128xf32>
    %c0_5 = arith.constant 0 : index
    %c0_6 = arith.constant 0 : index
    %6 = vector.load %arg4[%c0_5, %c0_6] : memref<8x128xf32, #tpu.memory_space<vmem>>, vector<8x128xf32>
    tpu.vector_store %arg4[%c0_5, %c0_6], %5 {strides = array<i32>} : memref<8x128xf32, #tpu.memory_space<vmem>>, vector<8x128xf32>,
    return
  }
  func.func @transform_0(%arg0: i32) -> (i32, i32) {
    %c0_i32 = arith.constant 0 : i32
    %c0_i32_0 = arith.constant 0 : i32
    return %arg0, %c0_i32 : i32, i32
  }
  func.func @transform_1(%arg0: i32) -> (i32, i32) {
    %c0_i32 = arith.constant 0 : i32
    %c0_i32_0 = arith.constant 0 : i32
    %c0_i32_1 = arith.constant 0 : i32
    return %c0_i32, %c0_i32_0 : i32, i32
  }
  func.func @transform_2(%arg0: i32) -> (i32, i32) {
    %c0_i32 = arith.constant 0 : i32
    %c0_i32_0 = arith.constant 0 : i32
    %c0_i32_1 = arith.constant 0 : i32
    return %c0_i32, %c0_i32_0 : i32, i32
  }
  func.func @transform_3(%arg0: i32) -> (i32, i32) {
    %c0_i32 = arith.constant 0 : i32
    %c0_i32_0 = arith.constant 0 : i32
    return %arg0, %c0_i32 : i32, i32
  }
}

</mosaic_0001>

<llo_original>
// kernel: tpu_custom_call.1
$region0: #{tpu_custom_call.1}
  #allocation0 [shape = 'u32[]', space=smem, size = 0x4, offset = 0x4, fixed_abs, tag = 'smem constant byte address 0x4 - core index']
  #allocation1 [shape = 'u32[72,128]{1,0:T(1,128)}', space=vmem, size = 0x9000, scoped, tag = 'internal scratch']
  %s0 = inlined_call_operand.hbm [shape: bf16[8,32], index: 0, kind: input, shape index: {}]
  %s1 = inlined_call_operand.hbm [shape: bf16[32,128], index: 1, kind: input, shape index: {}]
  %s2 = inlined_call_operand.vmem [shape: f32[1,128], index: 2, kind: input, shape index: {}]
  %s3 = inlined_call_operand.hbm [shape: f32[8,128], index: 3, kind: output, shape index: {}]
  %s4 = sld [smem:[#allocation0]]
  $region30: #{tpu_custom_call.1} parent=0
    _
  %s6 = ssub.s32 1, %s4
  %s7 = scalar_select 0, %s6, %s4
  $region1: #{tpu_custom_call.1} parent=0
    #allocation2 [shape = 'u8[2048]{0}', space=vmem, size = 0x800, scoped, tag = 'input window, operand 0, single buffered']
    #allocation3 [shape = 's32[1]{0}', space=sflag, size = 0x4, scoped, tag = 'scoped memory for tpu_custom_call.1']
    #allocation4 [shape = 's32[1]{0}', space=sflag, size = 0x4, scoped, tag = 'scoped memory for tpu_custom_call.1']
    #allocation5 [shape = 'u8[8192]{0}', space=vmem, size = 0x2000, scoped, tag = 'input window, operand 1, single buffered']
    #allocation6 [shape = 's32[1]{0}', space=sflag, size = 0x4, scoped, tag = 'scoped memory for tpu_custom_call.1']
    #allocation7 [shape = 'u8[4096]{0}', space=vmem, size = 0x1000, scoped, tag = 'output window, operand 0, single buffered']
    %8 = vsyncpa [#allocation3], 0
    %9 = vsyncpa [#allocation6], 0
    %10 = vsyncpa [#allocation4], 0
    // Predicated region
    $region2: #{tpu_custom_call.1} parent=1 // pred_check
      _
    $region3: #{tpu_custom_call.1} parent=1 // pred_check_branch
      %12 = sbr.rel (0) target = $region5
    $region4: #{tpu_custom_call.1} parent=1 // pred_region
      %14 = vsyncadd [#allocation3], 0
      %s16 = sshll.u32 %s0, 4
      %s17 = int_to_ptr.hbm [resolvable:$true] %s16
      %s18 = sshll.u32 [#allocation2], 4
      %s19 = int_to_ptr.vmem [resolvable:$true] %s18
      %21 = dma.hbm_to_vmem [thread:$0]  %s17, 64, %s19, [#allocation3]
    $region5: #{tpu_custom_call.1} parent=1 // pred_fallthru
      _
    // Predicated region
    $region6: #{tpu_custom_call.1} parent=1 // pred_check
      _
    $region7: #{tpu_custom_call.1} parent=1 // pred_check_branch
      %23 = sbr.rel (0) target = $region9
    $region8: #{tpu_custom_call.1} parent=1 // pred_region
      %25 = vsyncadd [#allocation6], 0
      %s26 = sshll.u32 %s1, 4
      %s27 = int_to_ptr.hbm [resolvable:$true] %s26
      %s28 = sshll.u32 [#allocation5], 4
      %s29 = int_to_ptr.vmem [resolvable:$true] %s28
      %34 = dma.hbm_to_vmem [thread:$0]  %s27, 256, %s29, [#allocation6], 64, 64, 4
    $region9: #{tpu_custom_call.1} parent=1 // pred_fallthru
      _
    // Predicated region
    $region10: #{tpu_custom_call.1} parent=1 // pred_check
      _
    $region11: #{tpu_custom_call.1} parent=1 // pred_check_branch
      %36 = sbr.rel (0) target = $region13
    $region12: #{tpu_custom_call.1} parent=1 // pred_region
      _
    $region13: #{tpu_custom_call.1} parent=1 // pred_fallthru
      _
    // Predicated region
    $region14: #{tpu_custom_call.1} parent=1 // pred_check
      _
    $region15: #{tpu_custom_call.1} parent=1 // pred_check_branch
      %38 = sbr.rel (0) target = $region17
    $region16: #{tpu_custom_call.1} parent=1 // pred_region
      %40 = dma.done [#allocation3], 64
    $region17: #{tpu_custom_call.1} parent=1 // pred_fallthru
      _
    // Predicated region
    $region18: #{tpu_custom_call.1} parent=1 // pred_check
      _
    $region19: #{tpu_custom_call.1} parent=1 // pred_check_branch
      %42 = sbr.rel (0) target = $region21
    $region20: #{tpu_custom_call.1} parent=1 // pred_region
      %44 = dma.done [#allocation6], 256
    $region21: #{tpu_custom_call.1} parent=1 // pred_fallthru
      _
    %v46 = vld [vmem:[#allocation2] sm:$0xf]
    %v47 = vld [vmem:[#allocation5] sm:$0xf]
    %v48 = vld [vmem:[#allocation5 + $0x4] sm:$0xf]
    %v49 = vld [vmem:[#allocation5 + $0x8] sm:$0xf]
    %v50 = vld [vmem:[#allocation5 + $0xc] sm:$0xf]
    %v51 = vld [vmem:[%s2] sm:$0x1]
    %v53 = vperm.slane %v51, 0
    %v59 = vunpack.c.l.b16 %v47
    %v60 = vunpack.c.l.b16 %v48
    %v61 = vunpack.c.l.b16 %v49
    %v62 = vunpack.c.l.b16 %v50
    %v63 = vpack.c.b16 %v60, %v59
    %v64 = vpack.c.b16 %v62, %v61
    %vm67 = vcmask 261120
    %v69 = vsel %vm67, %v46, 0
    %71 = vmatpush.bf16.msra.mxu0 0
    %72 = vmatpush.bf16.msra.mxu0 0
    %73 = vmatpush.bf16.msra.mxu0 0
    %74 = vmatpush.bf16.msra.mxu0 0
    %75 = vmatpush.bf16.msra.mxu0 0
    %76 = vmatpush.bf16.msra.mxu0 0
    %77 = vmatpush.bf16.msra.mxu0 %v64
    %78 = vmatpush.bf16.msra.mxu0 %v63
    %79 = vmatmul.bf16.gmra.mxu0 %v69
    %v80 = vpop.f32.mrf.mxu0
    %v81 = vadd.f32 %v53, %v80
    %v82 = vpop.f32.mrf.mxu0
    %83 = vdwg.mxu0
    %84 = vst [vmem:[#allocation7] sm:$0xff] %v81
    // Predicated region
    $region22: #{tpu_custom_call.1} parent=1 // pred_check
      _
    $region23: #{tpu_custom_call.1} parent=1 // pred_check_branch
      %86 = sbr.rel (0) target = $region25
    $region24: #{tpu_custom_call.1} parent=1 // pred_region
      %88 = vsyncadd [#allocation4], 0
      %s90 = sshll.u32 [#allocation7], 4
      %s91 = int_to_ptr.vmem [resolvable:$true] %s90
      %s92 = sshll.u32 %s3, 4
      %s93 = int_to_ptr.hbm [resolvable:$true] %s92
      %95 = dma.vmem_to_hbm [thread:$0]  %s91, 128, %s93, [#allocation4]
    $region25: #{tpu_custom_call.1} parent=1 // pred_fallthru
      _
    // Predicated region
    $region26: #{tpu_custom_call.1} parent=1 // pred_check
      _
    $region27: #{tpu_custom_call.1} parent=1 // pred_check_branch
      %97 = sbr.rel (0) target = $region29
    $region28: #{tpu_custom_call.1} parent=1 // pred_region
      %99 = dma.done [#allocation4], 128
    $region29: #{tpu_custom_call.1} parent=1 // pred_fallthru
      _
    %100 = vsyncpa [#allocation3], 1
    %101 = vsyncpa [#allocation6], 1
    %102 = vsyncpa [#allocation4], 1

</llo_original>
